<compile_context>
chip_gen: v5e
topology: v5e:2x2
jax: 0.10.0
libtpu: 0.0.40
codegen_flags: <defaults>
</compile_context>

<pallas_src>
import functools
import math

import jax
import jax.numpy as jnp
from jax import lax
from jax.experimental import pallas as pl
from jax.experimental.pallas import tpu as pltpu

_VMEM_LIMIT = 48 * 1024 * 1024          # safe on v5e / v6e / v7x
_MM_PREC = jax.lax.Precision.HIGHEST    # full f32 accuracy for the interp matmuls


def _interp_matrix(l_out, l_in, dtype=jnp.float32):
    """[l_out, l_in] 1-D linear interpolation matrix (PyTorch align_corners=True semantics)."""
    if l_out == 1:
        src = jnp.zeros((1,), jnp.float32)
    else:
        src = jnp.arange(l_out, dtype=jnp.float32) * (float(l_in - 1) / float(l_out - 1))
    i0 = jnp.clip(jnp.floor(src), 0, l_in - 1).astype(jnp.int32)
    i1 = jnp.minimum(i0 + 1, l_in - 1)
    w1 = src - i0.astype(jnp.float32)
    w0 = 1.0 - w1
    m = (w0[:, None] * jax.nn.one_hot(i0, l_in, dtype=jnp.float32)
         + w1[:, None] * jax.nn.one_hot(i1, l_in, dtype=jnp.float32))
    return m.astype(dtype)


def _largest_divisor_leq(n, cap):
    cap = max(1, min(cap, n))
    for t in range(cap, 0, -1):
        if n % t == 0:
            return t
    return 1


# ---------------- Stage 1: depth-axis interpolation (factor folded in) ----------------

def _depth_kernel(md_ref, x_ref, o_ref):
    # md_ref: [Dout, Din]   x_ref: [1, Din, H*W]   o_ref: [1, Dout, H*W]
    md = md_ref[...]
    xv = x_ref[0]
    o_ref[0] = jnp.dot(md, xv, preferred_element_type=jnp.float32,
                       precision=_MM_PREC).astype(o_ref.dtype)


def _stage_depth(md, x3):
    # x3: [B*C, Din, H*W] -> [B*C, Dout, H*W]
    bc, din, hw = x3.shape
    dout = md.shape[0]
    return pl.pallas_call(
        _depth_kernel,
        out_shape=jax.ShapeDtypeStruct((bc, dout, hw), x3.dtype),
        grid_spec=pltpu.PrefetchScalarGridSpec(
            num_scalar_prefetch=0,
            grid=(bc,),
            in_specs=[
                pl.BlockSpec((dout, din), lambda i: (0, 0)),       # resident interp matrix
                pl.BlockSpec((1, din, hw), lambda i: (i, 0, 0)),
            ],
            out_specs=pl.BlockSpec((1, dout, hw), lambda i: (i, 0, 0)),
        ),
        compiler_params=pltpu.CompilerParams(
            dimension_semantics=("parallel",),
            vmem_limit_bytes=_VMEM_LIMIT),
    )(md, x3)


# ---------------- Stage 2: fused H-axis and W-axis interpolation ----------------

def _hw_kernel(mh_ref, mwT_ref, x_ref, o_ref, *, tile_d):
    # mh_ref: [Hout, Hin]  mwT_ref: [Win, Wout]  x_ref: [tile_d, Hin, Win]  o_ref: [tile_d, Hout, Wout]
    mh = mh_ref[...]
    mwT = mwT_ref[...]
    for i in range(tile_d):                       # static, unrolled over the row tile
        t = jnp.dot(mh, x_ref[i], preferred_element_type=jnp.float32, precision=_MM_PREC)
        o_ref[i] = jnp.dot(t, mwT, preferred_element_type=jnp.float32,
                           precision=_MM_PREC).astype(o_ref.dtype)


def _stage_hw(mh, mwT, x3):
    # x3: [B*C*Dout, Hin, Win] -> [B*C*Dout, Hout, Wout]
    n, hin, win = x3.shape
    hout = mh.shape[0]
    wout = mwT.shape[1]

    # Row tile: biggest divisor of n under a VMEM-derived cap (double-buffered in/out blocks), with an
    # unroll cap so per-step overhead (~0.35 us) is amortized without exploding compile time.
    bytes_per_row = 4 * 2 * (hin * win + hout * wout)
    cap = max(1, min(32, (24 * 1024 * 1024) // max(bytes_per_row, 1)))
    tile_d = _largest_divisor_leq(n, cap)

    kernel = functools.partial(_hw_kernel, tile_d=tile_d)
    return pl.pallas_call(
        kernel,
        out_shape=jax.ShapeDtypeStruct((n, hout, wout), x3.dtype),
        grid_spec=pltpu.PrefetchScalarGridSpec(
            num_scalar_prefetch=0,
            grid=(n // tile_d,),
            in_specs=[
                pl.BlockSpec((hout, hin), lambda i: (0, 0)),       # resident
                pl.BlockSpec((win, wout), lambda i: (0, 0)),       # resident
                pl.BlockSpec((tile_d, hin, win), lambda i: (i, 0, 0)),
            ],
            out_specs=pl.BlockSpec((tile_d, hout, wout), lambda i: (i, 0, 0)),
        ),
        compiler_params=pltpu.CompilerParams(
            dimension_semantics=("parallel",),
            vmem_limit_bytes=_VMEM_LIMIT),
    )(mh, mwT, x3)


# ---------------- Public wrapper matching ResizeTransformer_block.forward ----------------

def resize_transformer_block(x, resize_factor, mode="trilinear"):
    """x: [B, C, D, H, W]; returns [B, C, floor(D*f), floor(H*f), floor(W*f)] (identity if f == 1)."""
    if mode != "trilinear":
        # TODO(synk): only mode='trilinear' (the module's default) is implemented.
        raise NotImplementedError("only trilinear mode is supported")
    factor = float(resize_factor)
    if factor == 1.0:
        return x

    B, C, D, H, W = x.shape
    Do = int(math.floor(D * factor))
    Ho = int(math.floor(H * factor))
    Wo = int(math.floor(W * factor))

    md = _interp_matrix(Do, D) * jnp.float32(factor)   # fold the scalar factor (linear op commutes)
    mh = _interp_matrix(Ho, H)
    mwT = _interp_matrix(Wo, W).T                      # [W, Wo]

    x3 = x.reshape(B * C, D, H * W)                    # free reshape (merge leading dims)
    y1 = _stage_depth(md, x3)                          # [B*C, Do, H*W]
    y2 = _stage_hw(mh, mwT, y1.reshape(B * C * Do, H, W))   # [B*C*Do, Ho, Wo]
    return y2.reshape(B, C, Do, Ho, Wo)


# ---------------- Independent pure-JAX reference (gather-based trilinear) ----------------

def _reference(x, factor):
    factor = float(factor)
    if factor == 1.0:
        return x
    B, C, D, H, W = x.shape
    Do, Ho, Wo = (int(math.floor(s * factor)) for s in (D, H, W))

    def axis(lo, li):
        if lo == 1:
            src = jnp.zeros((1,), jnp.float32)
        else:
            src = jnp.arange(lo, dtype=jnp.float32) * (float(li - 1) / float(lo - 1))
        i0 = jnp.clip(jnp.floor(src), 0, li - 1).astype(jnp.int32)
        i1 = jnp.minimum(i0 + 1, li - 1)
        w1 = src - i0.astype(jnp.float32)
        return i0, i1, 1.0 - w1, w1

    d0, d1, wd0, wd1 = axis(Do, D)
    h0, h1, wh0, wh1 = axis(Ho, H)
    w0, w1_, ww0, ww1 = axis(Wo, W)

    xs = x * factor if factor > 1 else x               # PyTorch op order
    out = jnp.zeros((B, C, Do, Ho, Wo), jnp.float32)
    for di, wd in ((d0, wd0), (d1, wd1)):
        for hi, wh in ((h0, wh0), (h1, wh1)):
            for wi, ww in ((w0, ww0), (w1_, ww1)):
                g = xs[:, :, di[:, None, None], hi[None, :, None], wi[None, None, :]]
                out = out + g * (wd[:, None, None] * wh[None, :, None] * ww[None, None, :])
    if factor < 1:
        out = out * factor
    return out.astype(x.dtype)


if __name__ == "__main__":
    key = jax.random.PRNGKey(0)
    B, C, D, H, W = 2, 3, 8, 8, 8
    x = jax.random.normal(key, (B, C, D, H, W), jnp.float32)

    # factor > 1 branch (scale then upsample)
    up = jax.block_until_ready(resize_transformer_block(x, 2.0))
    assert up.shape == (B, C, 16, 16, 16), up.shape
    err_up = float(jnp.max(jnp.abs(up - _reference(x, 2.0))))
    assert err_up < 2e-3, err_up

    # factor < 1 branch (downsample then scale)
    dn = jax.block_until_ready(resize_transformer_block(x, 0.5))
    assert dn.shape == (B, C, 4, 4, 4), dn.shape
    err_dn = float(jnp.max(jnp.abs(dn - _reference(x, 0.5))))
    assert err_dn < 2e-3, err_dn

    # factor == 1 is identity
    same = resize_transformer_block(x, 1.0)
    assert same.shape == x.shape

    print("KERNEL_OK")
</pallas_src>

<mosaic_0001>
module attributes {stable_mosaic.version = 11 : i64} {
  func.func @_depth_kernel(%arg0: i32, %arg1: memref<16x8xf32, #tpu.memory_space<vmem>>, %arg2: memref<1x8x64xf32, #tpu.memory_space<vmem>>, %arg3: memref<1x16x64xf32, #tpu.memory_space<vmem>>) attributes {dimension_semantics = [#tpu.dimension_semantics<parallel>], iteration_bounds = array<i64: 6>, scalar_prefetch = 0 : i64, scratch_operands = 0 : i64, tpu.core_type = #tpu.core_type<tc>, window_params = [{pipeline_mode = #tpu.pipeline_mode<synchronous>, transform_indices = @transform_0, window_bounds = array<i64: 16, 8>}, {transform_indices = @transform_1, window_bounds = array<i64: 1, 8, 64>}, {transform_indices = @transform_2, window_bounds = array<i64: 1, 16, 64>}]} {
    %c0 = arith.constant 0 : index
    %c0_0 = arith.constant 0 : index
    %0 = vector.load %arg1[%c0, %c0_0] : memref<16x8xf32, #tpu.memory_space<vmem>>, vector<16x8xf32>
    %c0_1 = arith.constant 0 : index
    %c0_2 = arith.constant 0 : index
    %c0_3 = arith.constant 0 : index
    %1 = vector.load %arg2[%c0_1, %c0_2, %c0_3] : memref<1x8x64xf32, #tpu.memory_space<vmem>>, vector<1x8x64xf32>
    %2 = vector.shape_cast %1 : vector<1x8x64xf32> to vector<8x64xf32>
    %cst = arith.constant dense<0.000000e+00> : vector<16x64xf32>
    %3 = tpu.matmul %0, %2, %cst {dimension_numbers = #tpu.dot_dimension_numbers<[1], [0], [0], [1], [0, 0, 1, 1], [], []>, precision = #tpu.contract_precision<fp32>} : vector<16x8xf32>, vector<8x64xf32>, vector<16x64xf32> -> vector<16x64xf32>
    %c0_4 = arith.constant 0 : index
    %c0_5 = arith.constant 0 : index
    %c0_6 = arith.constant 0 : index
    %4 = vector.load %arg3[%c0_4, %c0_5, %c0_6] : memref<1x16x64xf32, #tpu.memory_space<vmem>>, vector<1x16x64xf32>
    %5 = vector.shape_cast %4 : vector<1x16x64xf32> to vector<16x64xf32>
    %6 = vector.shape_cast %3 : vector<16x64xf32> to vector<1x16x64xf32>
    tpu.vector_store %arg3[%c0_4, %c0_5, %c0_6], %6 {strides = array<i32>} : memref<1x16x64xf32, #tpu.memory_space<vmem>>, vector<1x16x64xf32>,
    return
  }
  func.func @transform_0(%arg0: i32) -> (i32, i32) {
    %c0_i32 = arith.constant 0 : i32
    %c0_i32_0 = arith.constant 0 : i32
    %c0_i32_1 = arith.constant 0 : i32
    return %c0_i32, %c0_i32_0 : i32, i32
  }
  func.func @transform_1(%arg0: i32) -> (i32, i32, i32) {
    %c0_i32 = arith.constant 0 : i32
    %c0_i32_0 = arith.constant 0 : i32
    %c0_i32_1 = arith.constant 0 : i32
    return %arg0, %c0_i32, %c0_i32_0 : i32, i32, i32
  }
  func.func @transform_2(%arg0: i32) -> (i32, i32, i32) {
    %c0_i32 = arith.constant 0 : i32
    %c0_i32_0 = arith.constant 0 : i32
    %c0_i32_1 = arith.constant 0 : i32
    return %arg0, %c0_i32, %c0_i32_0 : i32, i32, i32
  }
}

</mosaic_0001>

<llo_original>
// kernel: tpu_custom_call.1
$region0: #{tpu_custom_call.1}
  #allocation0 [shape = 'u32[]', space=smem, size = 0x4, offset = 0x4, fixed_abs, tag = 'smem constant byte address 0x4 - core index']
  #allocation1 [shape = 'u32[72,128]{1,0:T(1,128)}', space=vmem, size = 0x9000, scoped, tag = 'internal scratch']
  %s0 = inlined_call_operand.vmem [shape: f32[16,8], index: 0, kind: input, shape index: {}]
  %s1 = inlined_call_operand.hbm [shape: f32[6,8,64], index: 1, kind: input, shape index: {}]
  %s2 = inlined_call_operand.hbm [shape: f32[6,16,64], index: 2, kind: output, shape index: {}]
  %s3 = sld [smem:[#allocation0]]
  $region45: #{tpu_custom_call.1} parent=0
    _
  %s5 = ssub.s32 1, %s3
  %s6 = scalar_select 0, %s5, %s3
  $region1: #{tpu_custom_call.1} parent=0
    #allocation2 [shape = 'u8[8192]{0}', space=vmem, size = 0x2000, scoped, tag = 'input window, operand 1']
    #allocation3 [shape = 's32[2]{0}', space=sflag, size = 0x8, scoped, tag = 'scoped memory for tpu_custom_call.1']
    #allocation4 [shape = 's32[2]{0}', space=sflag, size = 0x8, scoped, tag = 'scoped memory for tpu_custom_call.1']
    #allocation5 [shape = 'u8[16384]{0}', space=vmem, size = 0x4000, scoped, tag = 'output window, operand 0']
    %7 = vsyncpa [#allocation3], 0
    %s8 = scalar_lea.sflag [#allocation3], 1
    %9 = vsyncpa %s8, 0
    %10 = vsyncpa [#allocation4], 0
    %s11 = scalar_lea.sflag [#allocation4], 1
    %12 = vsyncpa %s11, 0
    loop: start=0, step=1, limit=8
    $region2: #{tpu_custom_call.1} parent=1 // loop_pre_header
      _
    $region3: #{tpu_custom_call.1} parent=1 // loop_header
      %s14 = sphi 0, %s18
      %p15 = scmp.ge.s32.totalorder %s14, 8
      %s22 = sphi 0, %s22
      %s24 = sphi 0, %s22
      %s25 = sphi 0, %s24
      %s39 = sphi 0, %s25
      %s45 = sphi 0, %s47
      %s48 = sphi 0, %s45
      %s49 = sphi 0, %s48
      %s65 = sphi 0, %s49
      %s71 = sphi 0, %s73
      %s74 = sphi 0, %s71
      %s75 = sphi 0, %s74
      %s91 = sphi 0, %s75
    $region4: #{tpu_custom_call.1} parent=1 // loop_header_branch
      %17 = sbr.rel (%p15) target = $region8
    $region5: #{tpu_custom_call.1} parent=1 // loop_body
      %s19 = ssub.s32 %s14, 1
      %s20 = ssub.s32 %s14, 2
      %s21 = sadd.s32 %s14, 1
      %s23 = sadd.s32 %s22, 1
      %p26 = scmp.eq.s32.totalorder %s14, 5
      %p27 = scmp.ne.s32.totalorder %s22, %s24
      %p28 = scmp.eq.s32.totalorder %s14, 0
      %p29 = por %p27, %p28
      %p30 = scmp.ne.s32.totalorder %s22, %s24
      %p31 = scmp.eq.s32.totalorder %s19, 5
      %p32 = por %p30, %p31
      %p33 = scmp.ne.s32.totalorder %s24, %s25
      %p34 = scmp.eq.s32.totalorder %s19, 0
      %p35 = por %p33, %p34
      %p36 = scmp.ne.s32.totalorder %s24, %s25
      %p37 = scmp.eq.s32.totalorder %s20, 5
      %p38 = por %p36, %p37
      %p40 = scmp.ne.s32.totalorder %s25, %s39
      %p41 = scmp.eq.s32.totalorder %s20, 0
      %p42 = por %p40, %p41
      %s43 = ssub.s32 %s14, %s21
      %p44 = scmp.eq.s32.totalorder %s43, 0
      %s46 = sadd.s32 %s45, 1
      %s47 = scalar_select %p44, %s45, %s46
      %p50 = pneg %p44
      %p51 = scmp.eq.s32.totalorder %s14, 5
      %p52 = por %p50, %p51
      %p53 = scmp.ne.s32.totalorder %s45, %s48
      %p54 = scmp.eq.s32.totalorder %s14, 0
      %p55 = por %p53, %p54
      %p56 = scmp.ne.s32.totalorder %s45, %s48
      %p57 = scmp.eq.s32.totalorder %s19, 5
      %p58 = por %p56, %p57
      %p59 = scmp.ne.s32.totalorder %s48, %s49
      %p60 = scmp.eq.s32.totalorder %s19, 0
      %p61 = por %p59, %p60
      %p62 = scmp.ne.s32.totalorder %s48, %s49
      %p63 = scmp.eq.s32.totalorder %s20, 5
      %p64 = por %p62, %p63
      %p66 = scmp.ne.s32.totalorder %s49, %s65
      %p67 = scmp.eq.s32.totalorder %s20, 0
      %p68 = por %p66, %p67
      %s69 = ssub.s32 %s14, %s21
      %p70 = scmp.eq.s32.totalorder %s69, 0
      %s72 = sadd.s32 %s71, 1
      %s73 = scalar_select %p70, %s71, %s72
      %p76 = pneg %p70
      %p77 = scmp.eq.s32.totalorder %s14, 5
      %p78 = por %p76, %p77
      %p79 = scmp.ne.s32.totalorder %s71, %s74
      %p80 = scmp.eq.s32.totalorder %s14, 0
      %p81 = por %p79, %p80
      %p82 = scmp.ne.s32.totalorder %s71, %s74
      %p83 = scmp.eq.s32.totalorder %s19, 5
      %p84 = por %p82, %p83
      %p85 = scmp.ne.s32.totalorder %s74, %s75
      %p86 = scmp.eq.s32.totalorder %s19, 0
      %p87 = por %p85, %p86
      %p88 = scmp.ne.s32.totalorder %s74, %s75
      %p89 = scmp.eq.s32.totalorder %s20, 5
      %p90 = por %p88, %p89
      %p92 = scmp.ne.s32.totalorder %s75, %s91
      %p93 = scmp.eq.s32.totalorder %s20, 0
      %p94 = por %p92, %p93
      %p95 = scmp.le.s32.totalorder 1, %s14
      %p96 = scmp.lt.s32.totalorder %s14, 7
      %p97 = pnand %p95, %p96
      %p98 = pneg %p97
      // Predicated region
      $region9: #{tpu_custom_call.1} parent=5 // pred_check
        _
      $region10: #{tpu_custom_call.1} parent=5 // pred_check_branch
        %100 = sbr.rel (%p97) target = $region12
      $region11: #{tpu_custom_call.1} parent=5 // pred_region
        %s101 = ssub.s32 %s14, 1
        // Predicated region
        $region13: #{tpu_custom_call.1} parent=11 // pred_check
          %p102 = pneg %p35
        $region14: #{tpu_custom_call.1} parent=11 // pred_check_branch
          %104 = sbr.rel (%p102) target = $region16
        $region15: #{tpu_custom_call.1} parent=11 // pred_region
          _
        $region16: #{tpu_custom_call.1} parent=11 // pred_fallthru
          _
      $region12: #{tpu_custom_call.1} parent=5 // pred_fallthru
        _
      %p105 = scmp.lt.s32.totalorder %s14, 6
      // Predicated region
      $region17: #{tpu_custom_call.1} parent=5 // pred_check
        %p106 = pneg %p105
      $region18: #{tpu_custom_call.1} parent=5 // pred_check_branch
        %108 = sbr.rel (%p106) target = $region20
      $region19: #{tpu_custom_call.1} parent=5 // pred_region
        // Predicated region
        $region21: #{tpu_custom_call.1} parent=19 // pred_check
          %p109 = pneg %p55
        $region22: #{tpu_custom_call.1} parent=19 // pred_check_branch
          %111 = sbr.rel (%p109) target = $region24
        $region23: #{tpu_custom_call.1} parent=19 // pred_region
          %s112 = sand.u32 %s45, 1
          %s113 = scalar_lea.sflag [#allocation3], %s112
          %s114 = sand.u32 %s45, 1
          %s115 = smul.addr %s114, 8
          %s116 = scalar_lea.vmem [#allocation2], %s115
          %118 = vsyncadd %s113, 0
          %s119 = smul.addr %s14, 8
          %s120 = scalar_lea.hbm %s1, %s119
          %s122 = sshll.u32 %s120, 4
          %s123 = int_to_ptr.hbm [resolvable:$true] %s122
          %s124 = sshll.u32 %s116, 4
          %s125 = int_to_ptr.vmem [resolvable:$true] %s124
          %127 = dma.hbm_to_vmem [thread:$0]  %s123, 128, %s125, %s113
        $region24: #{tpu_custom_call.1} parent=19 // pred_fallthru
          _
      $region20: #{tpu_custom_call.1} parent=5 // pred_fallthru
        _
      %p128 = scmp.le.s32.totalorder 1, %s14
      %p129 = scmp.lt.s32.totalorder %s14, 7
      %p130 = pnand %p128, %p129
      %p131 = pneg %p130
      // Predicated region
      $region25: #{tpu_custom_call.1} parent=5 // pred_check
        _
      $region26: #{tpu_custom_call.1} parent=5 // pred_check_branch
        %133 = sbr.rel (%p130) target = $region28
      $region27: #{tpu_custom_call.1} parent=5 // pred_region
        %s134 = ssub.s32 %s14, 1
        %s135 = sand.u32 %s48, 1
        %s136 = scalar_lea.sflag [#allocation3], %s135
        %s137 = sand.u32 %s48, 1
        %s138 = smul.addr %s137, 8
        %s139 = scalar_lea.vmem [#allocation2], %s138
        // Predicated region
        $region29: #{tpu_custom_call.1} parent=27 // pred_check
          %p140 = pneg %p61
        $region30: #{tpu_custom_call.1} parent=27 // pred_check_branch
          %142 = sbr.rel (%p140) target = $region32
        $region31: #{tpu_custom_call.1} parent=27 // pred_region
          %144 = dma.done %s136, 128
        $region32: #{tpu_custom_call.1} parent=27 // pred_fallthru
          _
        %p145 = pneg %p35
        %p146 = pneg %p32
        %s147 = sand.u32 %s48, 1
        %s148 = scalar_lea.sflag [#allocation3], %s147
        %s149 = sand.u32 %s48, 1
        %s150 = smul.addr %s149, 8
        %s151 = scalar_lea.vmem [#allocation2], %s150
        %p152 = pneg %p61
        %p153 = pneg %p58
        %p154 = pneg %p87
        %p155 = pneg %p84
        %s156 = sand.u32 %s74, 1
        %s157 = scalar_lea.sflag [#allocation4], %s156
        %s158 = sand.u32 %s74, 1
        %s159 = smul.addr %s158, 16
        %s160 = scalar_lea.vmem [#allocation5], %s159
        %v161 = vld [vmem:[%s0] sm:$0xff]
        %v162 = vld [vmem:[%s0 + $0x8] sm:$0xff]
        %v163 = vld [vmem:[%s139] sm:$0xff]
        %vm164 = vcmask 64512
        %v166 = vsel %vm164, %v161, 0
        %v169 = vsel %vm164, %v162, 0
        %171 = vmatpush.msra.mxu0 0.0
        %172 = vmatpush.msra.mxu0 0.0
        %173 = vmatpush.msra.mxu0 0.0
        %174 = vmatpush.msra.mxu0 0.0
        %175 = vmatpush.msra.mxu0 0.0
        %176 = vmatpush.msra.mxu0 0.0
        %177 = vmatpush.msra.mxu0 0.0
        %178 = vmatpush.msra.mxu0 0.0
        %179 = vmatpush.msra.mxu0 0.0
        %180 = vmatpush.msra.mxu0 0.0
        %181 = vmatpush.msra.mxu0 0.0
        %182 = vmatpush.msra.mxu0 0.0
        %183 = vmatpush.msra.mxu0 0.0
        %184 = vmatpush.msra.mxu0 0.0
        %185 = vmatpush.msra.mxu0 0.0
        %v186 = vand.u32 %v163, 4294901760
        %187 = vmatpush.msra.mxu0 %v186
        %v188 = vand.u32 %v166, 4294901760
        %v189 = vsub.f32 %v166, %v188
        %v190 = vand.u32 %v189, 4294901760
        %v191 = vsub.f32 %v189, %v190
        %v192 = vand.u32 %v191, 4294901760
        %193 = vmatmul.f32.gmra.mxu0 %v192
        %v194 = vpop.f32.mrf.mxu0
        %v195 = vadd.f32 0.0, %v194
        %v196 = vand.u32 %v169, 4294901760
        %v197 = vsub.f32 %v169, %v196
        %v198 = vand.u32 %v197, 4294901760
        %v199 = vsub.f32 %v197, %v198
        %v200 = vand.u32 %v199, 4294901760
        %201 = vmatmul.f32.gmra.mxu0 %v200
        %v202 = vpop.f32.mrf.mxu0
        %v203 = vadd.f32 0.0, %v202
        %204 = vdwg.mxu0
        %205 = vmatpush.msra.mxu0 0.0
        %206 = vmatpush.msra.mxu0 0.0
        %207 = vmatpush.msra.mxu0 0.0
        %208 = vmatpush.msra.mxu0 0.0
        %209 = vmatpush.msra.mxu0 0.0
        %210 = vmatpush.msra.mxu0 0.0
        %211 = vmatpush.msra.mxu0 0.0
        %212 = vmatpush.msra.mxu0 0.0
        %213 = vmatpush.msra.mxu0 0.0
        %214 = vmatpush.msra.mxu0 0.0
        %215 = vmatpush.msra.mxu0 0.0
        %216 = vmatpush.msra.mxu0 0.0
        %217 = vmatpush.msra.mxu0 0.0
        %218 = vmatpush.msra.mxu0 0.0
        %219 = vmatpush.msra.mxu0 0.0
        %v220 = vand.u32 %v163, 4294901760
        %v221 = vsub.f32 %v163, %v220
        %v222 = vand.u32 %v221, 4294901760
        %v223 = vsub.f32 %v221, %v222
        %v224 = vand.u32 %v223, 4294901760
        %225 = vmatpush.msra.mxu0 %v224
        %v226 = vand.u32 %v166, 4294901760
        %227 = vmatmul.f32.gmra.mxu0 %v226
        %v228 = vpop.f32.mrf.mxu0
        %v229 = vadd.f32 %v195, %v228
        %v230 = vand.u32 %v169, 4294901760
        %231 = vmatmul.f32.gmra.mxu0 %v230
        %v232 = vpop.f32.mrf.mxu0
        %v233 = vadd.f32 %v203, %v232
        %234 = vdwg.mxu0
        %235 = vmatpush.msra.mxu0 0.0
        %236 = vmatpush.msra.mxu0 0.0
        %237 = vmatpush.msra.mxu0 0.0
        %238 = vmatpush.msra.mxu0 0.0
        %239 = vmatpush.msra.mxu0 0.0
        %240 = vmatpush.msra.mxu0 0.0
        %241 = vmatpush.msra.mxu0 0.0
        %242 = vmatpush.msra.mxu0 0.0
        %243 = vmatpush.msra.mxu0 0.0
        %244 = vmatpush.msra.mxu0 0.0
        %245 = vmatpush.msra.mxu0 0.0
        %246 = vmatpush.msra.mxu0 0.0
        %247 = vmatpush.msra.mxu0 0.0
        %248 = vmatpush.msra.mxu0 0.0
        %249 = vmatpush.msra.mxu0 0.0
        %v250 = vand.u32 %v163, 4294901760
        %v251 = vsub.f32 %v163, %v250
        %252 = vmatpush.msra.mxu0 %v251
        %v253 = vand.u32 %v166, 4294901760
        %v254 = vsub.f32 %v166, %v253
        %255 = vmatmul.f32.gmra.mxu0 %v254
        %v256 = vpop.f32.mrf.mxu0
        %v257 = vadd.f32 %v229, %v256
        %v258 = vand.u32 %v169, 4294901760
        %v259 = vsub.f32 %v169, %v258
        %260 = vmatmul.f32.gmra.mxu0 %v259
        %v261 = vpop.f32.mrf.mxu0
        %v262 = vadd.f32 %v233, %v261
        %263 = vdwg.mxu0
        %264 = vmatpush.msra.mxu0 0.0
        %265 = vmatpush.msra.mxu0 0.0
        %266 = vmatpush.msra.mxu0 0.0
        %267 = vmatpush.msra.mxu0 0.0
        %268 = vmatpush.msra.mxu0 0.0
        %269 = vmatpush.msra.mxu0 0.0
        %270 = vmatpush.msra.mxu0 0.0
        %271 = vmatpush.msra.mxu0 0.0
        %272 = vmatpush.msra.mxu0 0.0
        %273 = vmatpush.msra.mxu0 0.0
        %274 = vmatpush.msra.mxu0 0.0
        %275 = vmatpush.msra.mxu0 0.0
        %276 = vmatpush.msra.mxu0 0.0
        %277 = vmatpush.msra.mxu0 0.0
        %278 = vmatpush.msra.mxu0 0.0
        %v279 = vand.u32 %v163, 4294901760
        %280 = vmatpush.msra.mxu0 %v279
        %v281 = vand.u32 %v166, 4294901760
        %v282 = vsub.f32 %v166, %v281
        %v283 = vand.u32 %v282, 4294901760
        %284 = vmatmul.f32.gmra.mxu0 %v283
        %v285 = vpop.f32.mrf.mxu0
        %v286 = vadd.f32 %v257, %v285
        %v287 = vand.u32 %v169, 4294901760
        %v288 = vsub.f32 %v169, %v287
        %v289 = vand.u32 %v288, 4294901760
        %290 = vmatmul.f32.gmra.mxu0 %v289
        %v291 = vpop.f32.mrf.mxu0
        %v292 = vadd.f32 %v262, %v291
        %293 = vdwg.mxu0
        %294 = vmatpush.msra.mxu0 0.0
        %295 = vmatpush.msra.mxu0 0.0
        %296 = vmatpush.msra.mxu0 0.0
        %297 = vmatpush.msra.mxu0 0.0
        %298 = vmatpush.msra.mxu0 0.0
        %299 = vmatpush.msra.mxu0 0.0
        %300 = vmatpush.msra.mxu0 0.0
        %301 = vmatpush.msra.mxu0 0.0
        %302 = vmatpush.msra.mxu0 0.0
        %303 = vmatpush.msra.mxu0 0.0
        %304 = vmatpush.msra.mxu0 0.0
        %305 = vmatpush.msra.mxu0 0.0
        %306 = vmatpush.msra.mxu0 0.0
        %307 = vmatpush.msra.mxu0 0.0
        %308 = vmatpush.msra.mxu0 0.0
        %v309 = vand.u32 %v163, 4294901760
        %v310 = vsub.f32 %v163, %v309
        %v311 = vand.u32 %v310, 4294901760
        %312 = vmatpush.msra.mxu0 %v311
        %v313 = vand.u32 %v166, 4294901760
        %314 = vmatmul.f32.gmra.mxu0 %v313
        %v315 = vpop.f32.mrf.mxu0
        %v316 = vadd.f32 %v286, %v315
        %v317 = vand.u32 %v169, 4294901760
        %318 = vmatmul.f32.gmra.mxu0 %v317
        %v319 = vpop.f32.mrf.mxu0
        %v320 = vadd.f32 %v292, %v319
        %321 = vdwg.mxu0
        %322 = vmatpush.msra.mxu0 0.0
        %323 = vmatpush.msra.mxu0 0.0
        %324 = vmatpush.msra.mxu0 0.0
        %325 = vmatpush.msra.mxu0 0.0
        %326 = vmatpush.msra.mxu0 0.0
        %327 = vmatpush.msra.mxu0 0.0
        %328 = vmatpush.msra.mxu0 0.0
        %329 = vmatpush.msra.mxu0 0.0
        %330 = vmatpush.msra.mxu0 0.0
        %331 = vmatpush.msra.mxu0 0.0
        %332 = vmatpush.msra.mxu0 0.0
        %333 = vmatpush.msra.mxu0 0.0
        %334 = vmatpush.msra.mxu0 0.0
        %335 = vmatpush.msra.mxu0 0.0
        %336 = vmatpush.msra.mxu0 0.0
        %v337 = vand.u32 %v163, 4294901760
        %338 = vmatpush.msra.mxu0 %v337
        %v339 = vand.u32 %v166, 4294901760
        %340 = vmatmul.f32.gmra.mxu0 %v339
        %v341 = vpop.f32.mrf.mxu0
        %v342 = vadd.f32 %v316, %v341
        %v343 = vand.u32 %v169, 4294901760
        %344 = vmatmul.f32.gmra.mxu0 %v343
        %v345 = vpop.f32.mrf.mxu0
        %v346 = vadd.f32 %v320, %v345
        %347 = vdwg.mxu0
        %vm348 = vcmask 523264
        %349 = vst.msk [vmem:[%s160] sm:$0xff] %vm348, %v342
        %350 = vst.msk [vmem:[%s160 + $0x8] sm:$0xff] %vm348, %v346
        %s351 = sand.u32 %s74, 1
        %s352 = scalar_lea.sflag [#allocation4], %s351
        %s353 = sand.u32 %s74, 1
        %s354 = smul.addr %s353, 16
        %s355 = scalar_lea.vmem [#allocation5], %s354
        // Predicated region
        $region33: #{tpu_custom_call.1} parent=27 // pred_check
          %p356 = pneg %p84
        $region34: #{tpu_custom_call.1} parent=27 // pred_check_branch
          %358 = sbr.rel (%p356) target = $region36
        $region35: #{tpu_custom_call.1} parent=27 // pred_region
          %360 = vsyncadd %s352, 0
          %s361 = smul.addr %s19, 2
          %s362 = smul.addr %s361, 8
          %s363 = scalar_lea.hbm %s2, %s362
          %s364 = sshll.u32 %s355, 4
          %s365 = int_to_ptr.vmem [resolvable:$true] %s364
          %s366 = sshll.u32 %s363, 4
          %s367 = int_to_ptr.hbm [resolvable:$true] %s366
          %372 = dma.vmem_to_hbm [thread:$0]  %s365, 256, %s367, %s352, 128, 128, 8
        $region36: #{tpu_custom_call.1} parent=27 // pred_fallthru
          _
      $region28: #{tpu_custom_call.1} parent=5 // pred_fallthru
        _
      %p373 = scmp.le.s32.totalorder 2, %s14
      // Predicated region
      $region37: #{tpu_custom_call.1} parent=5 // pred_check
        %p374 = pneg %p373
      $region38: #{tpu_custom_call.1} parent=5 // pred_check_branch
        %376 = sbr.rel (%p374) target = $region40
      $region39: #{tpu_custom_call.1} parent=5 // pred_region
        %s377 = ssub.s32 %s14, 2
        // Predicated region
        $region41: #{tpu_custom_call.1} parent=39 // pred_check
          %p378 = pneg %p90
        $region42: #{tpu_custom_call.1} parent=39 // pred_check_branch
          %380 = sbr.rel (%p378) target = $region44
        $region43: #{tpu_custom_call.1} parent=39 // pred_region
          %s381 = sand.u32 %s75, 1
          %s382 = scalar_lea.sflag [#allocation4], %s381
          %s383 = sand.u32 %s75, 1
          %s384 = smul.addr %s383, 16
          %s385 = scalar_lea.vmem [#allocation5], %s384
          %387 = dma.done %s382, 256
        $region44: #{tpu_custom_call.1} parent=39 // pred_fallthru
          _
      $region40: #{tpu_custom_call.1} parent=5 // pred_fallthru
        _
    $region6: #{tpu_custom_call.1} parent=1 // loop_footer
      %s18 = sadd.s32 1, %s14
    $region7: #{tpu_custom_call.1} parent=1 // loop_footer_branch
      %13 = sbr.rel target = $region3
    $region8: #{tpu_custom_call.1} parent=1 // loop_exit
      _
    %388 = vsyncpa [#allocation3], 1
    %s389 = scalar_lea.sflag [#allocation3], 1
    %390 = vsyncpa %s389, 1
    %391 = vsyncpa [#allocation4], 1
    %s392 = scalar_lea.sflag [#allocation4], 1
    %393 = vsyncpa %s392, 1

</llo_original>
